<compile_context>
chip_gen: v6e
topology: v6e:2x2x1
jax: 0.10.0
libtpu: 0.0.40
codegen_flags: <defaults>
</compile_context>

<pallas_src>
import functools

import jax
import jax.numpy as jnp
from jax.experimental import pallas as pl
from jax.experimental.pallas import tpu as pltpu

LANES = 128
IN_F, H1, H2, OUT = 1, 100, 50, 2
OUT_PAD = 8          # narrow kernel output width (>= OUT, sublane-friendly)

# Row layout of the packed parameter slab (rows x 128 lanes), all f32:
ROW_W1 = 0           # fc1 weight row: (1, 100) -> lanes [0:100)
ROW_B1 = 1           # fc1 bias
ROW_B2 = 2           # fc2 bias
ROW_B3 = 3           # fc3 bias        (rows 4..7 pad so w2 starts 8-aligned)
ROW_W2 = 8           # fc2 weight: (100, 50) zero-padded to (128, 128)
ROW_W3 = 136         # fc3 weight: (50, 2)  zero-padded to (128, 128)
N_ROWS = 264         # multiple of 8


def mlp_kernel(x_ref, p_ref, o_ref):
    x = x_ref[...]                                     # (TB, 1)

    # Static, (8,128)-aligned slices of the single resident parameter slab.
    w1 = p_ref[ROW_W1:ROW_W1 + 1, :]                   # (1, 128)
    b1 = p_ref[ROW_B1:ROW_B1 + 1, :]                   # (1, 128)
    b2 = p_ref[ROW_B2:ROW_B2 + 1, :]                   # (1, 128)
    b3 = p_ref[ROW_B3:ROW_B3 + 1, :]                   # (1, 128)
    w2 = p_ref[ROW_W2:ROW_W2 + LANES, :]               # (128, 128)
    w3 = p_ref[ROW_W3:ROW_W3 + LANES, :]               # (128, 128)

    # fc1: in_features == 1 -> broadcast multiply-add on the VPU (no MXU trip).
    h1 = jnp.maximum(x * w1 + b1, 0.0)                 # (TB, 128); lanes >= 100 stay 0

    # fc2 / fc3: lane-dense 128x128 MXU tiles, f32 accumulation. Zero padding inert.
    h2 = jnp.dot(h1, w2, preferred_element_type=jnp.float32) + b2
    h2 = jnp.maximum(h2, 0.0)                          # lanes >= 50 stay 0
    out = jnp.dot(h2, w3, preferred_element_type=jnp.float32) + b3   # (TB, 128)

    # Narrow store: only the first OUT_PAD lanes are written back to HBM.
    o_ref[...] = out[:, :OUT_PAD].astype(o_ref.dtype)  # (TB, OUT_PAD)


def pack_params(w1, b1, w2, b2, w3, b3):
    """Pack all parameters into one lane-padded (N_ROWS, 128) f32 slab (one DMA)."""
    p = jnp.zeros((N_ROWS, LANES), jnp.float32)
    p = p.at[ROW_W1, :H1].set(w1.reshape(H1))
    p = p.at[ROW_B1, :H1].set(b1.reshape(H1))
    p = p.at[ROW_B2, :H2].set(b2.reshape(H2))
    p = p.at[ROW_B3, :OUT].set(b3.reshape(OUT))
    p = p.at[ROW_W2:ROW_W2 + H1, :H2].set(w2)
    p = p.at[ROW_W3:ROW_W3 + H2, :OUT].set(w3)
    return p


@functools.partial(jax.jit, static_argnames=("tb",))
def mlp_forward(x, packed_params, tb=512):
    """x: (B, 1) f32 -> (B, 2) f32."""
    B = x.shape[0]
    # Sublane-aligned batch tile; never larger than the (rounded-up) batch.
    tb = max(8, min(tb, ((B + 7) // 8) * 8))
    grid = (pl.cdiv(B, tb),)                            # ragged last tile handled by Pallas

    out = pl.pallas_call(
        mlp_kernel,
        out_shape=jax.ShapeDtypeStruct((B, OUT_PAD), jnp.float32),
        grid=grid,
        in_specs=[
            pl.BlockSpec((tb, IN_F), lambda i: (i, 0)),           # batch-tiled input
            pl.BlockSpec((N_ROWS, LANES), lambda i: (0, 0)),      # params resident (one DMA)
        ],
        out_specs=pl.BlockSpec((tb, OUT_PAD), lambda i: (i, 0)),  # narrow batch-tiled output
        compiler_params=pltpu.CompilerParams(
            dimension_semantics=("parallel",)),                   # v7x dual-TC sharding
    )(x, packed_params)
    return out[:, :OUT]                                 # tiny (B, 8) -> (B, 2) slice


def init_params(key):
    # Deterministic synthetic init (shapes = nn.Linear(1,100),(100,50),(50,2),
    # stored as (in_features, out_features), i.e. PyTorch weight transposed).
    k1, k2, k3, k4, k5, k6 = jax.random.split(key, 6)
    w1 = jax.random.normal(k1, (IN_F, H1), jnp.float32) * 0.5
    b1 = jax.random.normal(k2, (1, H1), jnp.float32) * 0.1
    w2 = jax.random.normal(k3, (H1, H2), jnp.float32) * 0.1
    b2 = jax.random.normal(k4, (1, H2), jnp.float32) * 0.1
    w3 = jax.random.normal(k5, (H2, OUT), jnp.float32) * 0.1
    b3 = jax.random.normal(k6, (1, OUT), jnp.float32) * 0.1
    return w1, b1, w2, b2, w3, b3


def mlp_reference(x, w1, b1, w2, b2, w3, b3):
    h1 = jnp.maximum(x @ w1 + b1, 0.0)
    h2 = jnp.maximum(h1 @ w2 + b2, 0.0)
    return h2 @ w3 + b3


if __name__ == "__main__":
    key = jax.random.PRNGKey(0)
    kx_small, kx_big, kp = jax.random.split(key, 3)
    params = init_params(kp)
    packed = pack_params(*params)

    # Small, overhead-bound case (single tile).
    x_small = jax.random.normal(kx_small, (8, IN_F), jnp.float32)
    out_small = jax.block_until_ready(mlp_forward(x_small, packed))
    ref_small = mlp_reference(x_small, *params)
    assert out_small.shape == (8, OUT)
    assert jnp.allclose(out_small, ref_small, atol=1e-5, rtol=1e-5), "small-batch mismatch"

    # Larger ragged batch: exercises the pipelined batch grid + partial last tile.
    x_big = jax.random.normal(kx_big, (1000, IN_F), jnp.float32)
    out_big = jax.block_until_ready(mlp_forward(x_big, packed, tb=256))
    ref_big = mlp_reference(x_big, *params)
    assert out_big.shape == (1000, OUT)
    assert jnp.allclose(out_big, ref_big, atol=1e-4, rtol=1e-4), "large-batch mismatch"

    print("KERNEL_OK")
</pallas_src>

<mosaic_0001>
module attributes {stable_mosaic.version = 11 : i64} {
  func.func @mlp_kernel(%arg0: i32, %arg1: memref<8x1xf32, #tpu.memory_space<vmem>>, %arg2: memref<264x128xf32, #tpu.memory_space<vmem>>, %arg3: memref<8x8xf32, #tpu.memory_space<vmem>>) attributes {dimension_semantics = [#tpu.dimension_semantics<parallel>], iteration_bounds = array<i64: 1>, scalar_prefetch = 0 : i64, scratch_operands = 0 : i64, tpu.core_type = #tpu.core_type<tc>, window_params = [{transform_indices = @transform_0, window_bounds = array<i64: 8, 1>}, {pipeline_mode = #tpu.pipeline_mode<synchronous>, transform_indices = @transform_1, window_bounds = array<i64: 264, 128>}, {transform_indices = @transform_2, window_bounds = array<i64: 8, 8>}]} {
    %c0 = arith.constant 0 : index
    %c0_0 = arith.constant 0 : index
    %0 = vector.load %arg1[%c0, %c0_0] : memref<8x1xf32, #tpu.memory_space<vmem>>, vector<8x1xf32>
    %c0_1 = arith.constant 0 : index
    %c0_2 = arith.constant 0 : index
    %1 = vector.load %arg2[%c0_1, %c0_2] : memref<264x128xf32, #tpu.memory_space<vmem>>, vector<1x128xf32>
    %c1 = arith.constant 1 : index
    %c0_3 = arith.constant 0 : index
    %2 = vector.load %arg2[%c1, %c0_3] : memref<264x128xf32, #tpu.memory_space<vmem>>, vector<1x128xf32>
    %c2 = arith.constant 2 : index
    %c0_4 = arith.constant 0 : index
    %3 = vector.load %arg2[%c2, %c0_4] : memref<264x128xf32, #tpu.memory_space<vmem>>, vector<1x128xf32>
    %c3 = arith.constant 3 : index
    %c0_5 = arith.constant 0 : index
    %4 = vector.load %arg2[%c3, %c0_5] : memref<264x128xf32, #tpu.memory_space<vmem>>, vector<1x128xf32>
    %c8 = arith.constant 8 : index
    %c0_6 = arith.constant 0 : index
    %5 = vector.load %arg2[%c8, %c0_6] : memref<264x128xf32, #tpu.memory_space<vmem>>, vector<128x128xf32>
    %c136 = arith.constant 136 : index
    %c0_7 = arith.constant 0 : index
    %6 = vector.load %arg2[%c136, %c0_7] : memref<264x128xf32, #tpu.memory_space<vmem>>, vector<128x128xf32>
    %7 = vector.broadcast %0 : vector<8x1xf32> to vector<8x128xf32>
    %8 = vector.broadcast %1 : vector<1x128xf32> to vector<8x128xf32>
    %9 = arith.mulf %7, %8 : vector<8x128xf32>
    %10 = vector.broadcast %2 : vector<1x128xf32> to vector<8x128xf32>
    %11 = arith.addf %9, %10 : vector<8x128xf32>
    %cst = arith.constant 0.000000e+00 : f32
    %12 = vector.broadcast %cst : f32 to vector<8x128xf32>
    %13 = arith.maximumf %11, %12 : vector<8x128xf32>
    %cst_8 = arith.constant dense<0.000000e+00> : vector<8x128xf32>
    %14 = tpu.matmul %13, %5, %cst_8 {dimension_numbers = #tpu.dot_dimension_numbers<[1], [0], [0], [1], [0, 0, 1, 1], [], []>} : vector<8x128xf32>, vector<128x128xf32>, vector<8x128xf32> -> vector<8x128xf32>
    %15 = vector.broadcast %3 : vector<1x128xf32> to vector<8x128xf32>
    %16 = arith.addf %14, %15 : vector<8x128xf32>
    %cst_9 = arith.constant 0.000000e+00 : f32
    %17 = vector.broadcast %cst_9 : f32 to vector<8x128xf32>
    %18 = arith.maximumf %16, %17 : vector<8x128xf32>
    %cst_10 = arith.constant dense<0.000000e+00> : vector<8x128xf32>
    %19 = tpu.matmul %18, %6, %cst_10 {dimension_numbers = #tpu.dot_dimension_numbers<[1], [0], [0], [1], [0, 0, 1, 1], [], []>} : vector<8x128xf32>, vector<128x128xf32>, vector<8x128xf32> -> vector<8x128xf32>
    %20 = vector.broadcast %4 : vector<1x128xf32> to vector<8x128xf32>
    %21 = arith.addf %19, %20 : vector<8x128xf32>
    %22 = vector.extract_strided_slice %21 {offsets = [0, 0], sizes = [8, 8], strides = [1, 1]} : vector<8x128xf32> to vector<8x8xf32>
    %c0_11 = arith.constant 0 : index
    %c0_12 = arith.constant 0 : index
    %23 = vector.load %arg3[%c0_11, %c0_12] : memref<8x8xf32, #tpu.memory_space<vmem>>, vector<8x8xf32>
    tpu.vector_store %arg3[%c0_11, %c0_12], %22 {strides = array<i32>} : memref<8x8xf32, #tpu.memory_space<vmem>>, vector<8x8xf32>,
    return
  }
  func.func @transform_0(%arg0: i32) -> (i32, i32) {
    %c0_i32 = arith.constant 0 : i32
    %c0_i32_0 = arith.constant 0 : i32
    return %arg0, %c0_i32 : i32, i32
  }
  func.func @transform_1(%arg0: i32) -> (i32, i32) {
    %c0_i32 = arith.constant 0 : i32
    %c0_i32_0 = arith.constant 0 : i32
    %c0_i32_1 = arith.constant 0 : i32
    return %c0_i32, %c0_i32_0 : i32, i32
  }
  func.func @transform_2(%arg0: i32) -> (i32, i32) {
    %c0_i32 = arith.constant 0 : i32
    %c0_i32_0 = arith.constant 0 : i32
    return %arg0, %c0_i32 : i32, i32
  }
}

</mosaic_0001>

<llo_original>
// kernel: mlp_forward.1
$region0: #{mlp_forward.1}
  #allocation0 [shape = 'u32[]', space=smem, size = 0x4, offset = 0x4, fixed_abs, tag = 'smem constant byte address 0x4 - core index']
  #allocation1 [shape = 'u32[144,128]{1,0:T(1,128)}', space=vmem, size = 0x12000, scoped, tag = 'internal scratch']
  %s0 = inlined_call_operand.vmem [shape: f32[8,1], index: 0, kind: input, shape index: {}]
  %s1 = inlined_call_operand.hbm [shape: f32[264,128], index: 1, kind: input, shape index: {}]
  %s2 = inlined_call_operand.vmem [shape: f32[8,8], index: 2, kind: output, shape index: {}]
  %s3 = sld [smem:[#allocation0]]
  $region22: #{mlp_forward.1} parent=0
    _
  %s5 = ssub.s32 1, %s3
  %s6 = scalar_select 0, %s5, %s3
  $region1: #{mlp_forward.1} parent=0
    #allocation2 [shape = 'u8[135168]{0}', space=vmem, size = 0x21000, scoped, tag = 'input window, operand 1, single buffered']
    #allocation3 [shape = 's32[1]{0}', space=sflag, size = 0x4, scoped, tag = 'scoped memory for mlp_forward.1']
    %7 = vsyncpa [#allocation3], 0
    // Predicated region
    $region2: #{mlp_forward.1} parent=1 // pred_check
      _
    $region3: #{mlp_forward.1} parent=1 // pred_check_branch
      %9 = sbr.rel (0) target = $region5
    $region4: #{mlp_forward.1} parent=1 // pred_region
      _
    $region5: #{mlp_forward.1} parent=1 // pred_fallthru
      _
    // Predicated region
    $region6: #{mlp_forward.1} parent=1 // pred_check
      _
    $region7: #{mlp_forward.1} parent=1 // pred_check_branch
      %11 = sbr.rel (0) target = $region9
    $region8: #{mlp_forward.1} parent=1 // pred_region
      %s13 = ssub.s32 4224, 4224
      %14 = vsyncadd [#allocation3], %s13
      %s15 = sshll.u32 [#allocation2], 4
      %s16 = int_to_ptr.vmem [resolvable:$true] %s15
      %21 = dma.hbm_to_vmem [thread:$0]  %s1, 4224, %s16, [#allocation3], 128, 128, 8
    $region9: #{mlp_forward.1} parent=1 // pred_fallthru
      _
    // Predicated region
    $region10: #{mlp_forward.1} parent=1 // pred_check
      _
    $region11: #{mlp_forward.1} parent=1 // pred_check_branch
      %23 = sbr.rel (0) target = $region13
    $region12: #{mlp_forward.1} parent=1 // pred_region
      %24 = dma.done [#allocation3], 4224
    $region13: #{mlp_forward.1} parent=1 // pred_fallthru
      _
    %v25 = vld [vmem:[%s0] sm:$0xff]
    %v26 = vld [vmem:[#allocation2] sm:$0x1]
    %v27 = vld [vmem:[#allocation2 + $0x1] sm:$0x1]
    %v28 = vld [vmem:[#allocation2 + $0x2] sm:$0x1]
    %v29 = vld [vmem:[#allocation2 + $0x3] sm:$0x1]
    %v30 = vld [vmem:[#allocation2 + $0x8] sm:$0xff]
    %v31 = vld [vmem:[#allocation2 + $0x10] sm:$0xff]
    %v32 = vld [vmem:[#allocation2 + $0x18] sm:$0xff]
    %v33 = vld [vmem:[#allocation2 + $0x20] sm:$0xff]
    %v34 = vld [vmem:[#allocation2 + $0x28] sm:$0xff]
    %v35 = vld [vmem:[#allocation2 + $0x30] sm:$0xff]
    %v36 = vld [vmem:[#allocation2 + $0x38] sm:$0xff]
    %v37 = vld [vmem:[#allocation2 + $0x40] sm:$0xff]
    %v38 = vld [vmem:[#allocation2 + $0x48] sm:$0xff]
    %v39 = vld [vmem:[#allocation2 + $0x50] sm:$0xff]
    %v40 = vld [vmem:[#allocation2 + $0x58] sm:$0xff]
    %v41 = vld [vmem:[#allocation2 + $0x60] sm:$0xff]
    %v42 = vld [vmem:[#allocation2 + $0x68] sm:$0xff]
    %v43 = vld [vmem:[#allocation2 + $0x70] sm:$0xff]
    %v44 = vld [vmem:[#allocation2 + $0x78] sm:$0xff]
    %v45 = vld [vmem:[#allocation2 + $0x80] sm:$0xff]
    %v46 = vld [vmem:[#allocation2 + $0x88] sm:$0xff]
    %v47 = vld [vmem:[#allocation2 + $0x90] sm:$0xff]
    %v48 = vld [vmem:[#allocation2 + $0x98] sm:$0xff]
    %v49 = vld [vmem:[#allocation2 + $0xa0] sm:$0xff]
    %v50 = vld [vmem:[#allocation2 + $0xa8] sm:$0xff]
    %v51 = vld [vmem:[#allocation2 + $0xb0] sm:$0xff]
    %v52 = vld [vmem:[#allocation2 + $0xb8] sm:$0xff]
    %v53 = vld [vmem:[#allocation2 + $0xc0] sm:$0xff]
    %v54 = vld [vmem:[#allocation2 + $0xc8] sm:$0xff]
    %v55 = vld [vmem:[#allocation2 + $0xd0] sm:$0xff]
    %v56 = vld [vmem:[#allocation2 + $0xd8] sm:$0xff]
    %v57 = vld [vmem:[#allocation2 + $0xe0] sm:$0xff]
    %v58 = vld [vmem:[#allocation2 + $0xe8] sm:$0xff]
    %v59 = vld [vmem:[#allocation2 + $0xf0] sm:$0xff]
    %v60 = vld [vmem:[#allocation2 + $0xf8] sm:$0xff]
    %v61 = vld [vmem:[#allocation2 + $0x100] sm:$0xff]
    %63 = vset.pattern.permute.xlu0 0
    %64 = vperm.xlu0 %63, %v25
    %v65 = vpop.permute.xlu0 %64
    %v67 = vlaneseq
    %v68 = vshrl.u32 %v67, 7
    %v69 = vsub.s32 0, %v68
    %v70 = vrot.slane %v26, %v69
    %v71 = vmul.f32 %v65, %v70
    %v72 = vlaneseq
    %v73 = vshrl.u32 %v72, 7
    %v74 = vsub.s32 0, %v73
    %v75 = vrot.slane %v27, %v74
    %v76 = vadd.f32 %v71, %v75
    %v77 = vmax.f32 %v76, 0.0
    %v78 = vlaneseq
    %v79 = vshrl.u32 %v78, 7
    %v80 = vsub.s32 0, %v79
    %v81 = vrot.slane %v28, %v80
    %82 = vmatprep.subr.mxu0 0.0
    %83 = vmatpush1.msra.mxu0 %v45
    %84 = vmatprep.subr.mxu0 0.0
    %85 = vmatpush1.msra.mxu0 %v44
    %86 = vmatprep.subr.mxu0 0.0
    %87 = vmatpush1.msra.mxu0 %v43
    %88 = vmatprep.subr.mxu0 0.0
    %89 = vmatpush1.msra.mxu0 %v42
    %90 = vmatprep.subr.mxu0 0.0
    %91 = vmatpush1.msra.mxu0 %v41
    %92 = vmatprep.subr.mxu0 0.0
    %93 = vmatpush1.msra.mxu0 %v40
    %94 = vmatprep.subr.mxu0 0.0
    %95 = vmatpush1.msra.mxu0 %v39
    %96 = vmatprep.subr.mxu0 0.0
    %97 = vmatpush1.msra.mxu0 %v38
    %98 = vmatprep.subr.mxu0 0.0
    %99 = vmatpush1.msra.mxu0 %v37
    %100 = vmatprep.subr.mxu0 0.0
    %101 = vmatpush1.msra.mxu0 %v36
    %102 = vmatprep.subr.mxu0 0.0
    %103 = vmatpush1.msra.mxu0 %v35
    %104 = vmatprep.subr.mxu0 0.0
    %105 = vmatpush1.msra.mxu0 %v34
    %106 = vmatprep.subr.mxu0 0.0
    %107 = vmatpush1.msra.mxu0 %v33
    %108 = vmatprep.subr.mxu0 0.0
    %109 = vmatpush1.msra.mxu0 %v32
    %110 = vmatprep.subr.mxu0 0.0
    %111 = vmatpush1.msra.mxu0 %v31
    %112 = vmatprep.subr.mxu0 0.0
    %113 = vmatpush1.msra.mxu0 %v30
    %114 = vmatprep.subr.mxu0 0.0
    %115 = vmatpush2.msra.mxu0 0.0
    %116 = vmatprep.subr.mxu0 0.0
    %117 = vmatpush2.msra.mxu0 0.0
    %118 = vmatprep.subr.mxu0 0.0
    %119 = vmatpush2.msra.mxu0 0.0
    %120 = vmatprep.subr.mxu0 0.0
    %121 = vmatpush2.msra.mxu0 0.0
    %122 = vmatprep.subr.mxu0 0.0
    %123 = vmatpush2.msra.mxu0 0.0
    %124 = vmatprep.subr.mxu0 0.0
    %125 = vmatpush2.msra.mxu0 0.0
    %126 = vmatprep.subr.mxu0 0.0
    %127 = vmatpush2.msra.mxu0 0.0
    %128 = vmatprep.subr.mxu0 0.0
    %129 = vmatpush2.msra.mxu0 0.0
    %130 = vmatprep.subr.mxu0 0.0
    %131 = vmatpush2.msra.mxu0 0.0
    %132 = vmatprep.subr.mxu0 0.0
    %133 = vmatpush2.msra.mxu0 0.0
    %134 = vmatprep.subr.mxu0 0.0
    %135 = vmatpush2.msra.mxu0 0.0
    %136 = vmatprep.subr.mxu0 0.0
    %137 = vmatpush2.msra.mxu0 0.0
    %138 = vmatprep.subr.mxu0 0.0
    %139 = vmatpush2.msra.mxu0 0.0
    %140 = vmatprep.subr.mxu0 0.0
    %141 = vmatpush2.msra.mxu0 0.0
    %142 = vmatprep.subr.mxu0 0.0
    %143 = vmatpush2.msra.mxu0 0.0
    %144 = vmatprep.subr.mxu0 0.0
    %145 = vmatpush2.msra.mxu0 0.0
    %146 = vmatprep.mubr.f32.mxu0 0.0
    %147 = vmatmul.mubr.f32.gmra.mxu0 %v77
    %v148 = vpop.f32.mrf.mxu0
    %v149 = vadd.f32 %v81, %v148
    %v150 = vpop.f32.mrf.mxu0
    %151 = vdwg.mxu0
    %v152 = vmax.f32 %v149, 0.0
    %v153 = vlaneseq
    %v154 = vshrl.u32 %v153, 7
    %v155 = vsub.s32 0, %v154
    %v156 = vrot.slane %v29, %v155
    %157 = vmatprep.subr.mxu0 0.0
    %158 = vmatpush1.msra.mxu0 %v61
    %159 = vmatprep.subr.mxu0 0.0
    %160 = vmatpush1.msra.mxu0 %v60
    %161 = vmatprep.subr.mxu0 0.0
    %162 = vmatpush1.msra.mxu0 %v59
    %163 = vmatprep.subr.mxu0 0.0
    %164 = vmatpush1.msra.mxu0 %v58
    %165 = vmatprep.subr.mxu0 0.0
    %166 = vmatpush1.msra.mxu0 %v57
    %167 = vmatprep.subr.mxu0 0.0
    %168 = vmatpush1.msra.mxu0 %v56
    %169 = vmatprep.subr.mxu0 0.0
    %170 = vmatpush1.msra.mxu0 %v55
    %171 = vmatprep.subr.mxu0 0.0
    %172 = vmatpush1.msra.mxu0 %v54
    %173 = vmatprep.subr.mxu0 0.0
    %174 = vmatpush1.msra.mxu0 %v53
    %175 = vmatprep.subr.mxu0 0.0
    %176 = vmatpush1.msra.mxu0 %v52
    %177 = vmatprep.subr.mxu0 0.0
    %178 = vmatpush1.msra.mxu0 %v51
    %179 = vmatprep.subr.mxu0 0.0
    %180 = vmatpush1.msra.mxu0 %v50
    %181 = vmatprep.subr.mxu0 0.0
    %182 = vmatpush1.msra.mxu0 %v49
    %183 = vmatprep.subr.mxu0 0.0
    %184 = vmatpush1.msra.mxu0 %v48
    %185 = vmatprep.subr.mxu0 0.0
    %186 = vmatpush1.msra.mxu0 %v47
    %187 = vmatprep.subr.mxu0 0.0
    %188 = vmatpush1.msra.mxu0 %v46
    %189 = vmatprep.subr.mxu0 0.0
    %190 = vmatpush2.msra.mxu0 0.0
    %191 = vmatprep.subr.mxu0 0.0
    %192 = vmatpush2.msra.mxu0 0.0
    %193 = vmatprep.subr.mxu0 0.0
    %194 = vmatpush2.msra.mxu0 0.0
    %195 = vmatprep.subr.mxu0 0.0
    %196 = vmatpush2.msra.mxu0 0.0
    %197 = vmatprep.subr.mxu0 0.0
    %198 = vmatpush2.msra.mxu0 0.0
    %199 = vmatprep.subr.mxu0 0.0
    %200 = vmatpush2.msra.mxu0 0.0
    %201 = vmatprep.subr.mxu0 0.0
    %202 = vmatpush2.msra.mxu0 0.0
    %203 = vmatprep.subr.mxu0 0.0
    %204 = vmatpush2.msra.mxu0 0.0
    %205 = vmatprep.subr.mxu0 0.0
    %206 = vmatpush2.msra.mxu0 0.0
    %207 = vmatprep.subr.mxu0 0.0
    %208 = vmatpush2.msra.mxu0 0.0
    %209 = vmatprep.subr.mxu0 0.0
    %210 = vmatpush2.msra.mxu0 0.0
    %211 = vmatprep.subr.mxu0 0.0
    %212 = vmatpush2.msra.mxu0 0.0
    %213 = vmatprep.subr.mxu0 0.0
    %214 = vmatpush2.msra.mxu0 0.0
    %215 = vmatprep.subr.mxu0 0.0
    %216 = vmatpush2.msra.mxu0 0.0
    %217 = vmatprep.subr.mxu0 0.0
    %218 = vmatpush2.msra.mxu0 0.0
    %219 = vmatprep.subr.mxu0 0.0
    %220 = vmatpush2.msra.mxu0 0.0
    %221 = vmatprep.mubr.f32.mxu0 0.0
    %222 = vmatmul.mubr.f32.gmra.mxu0 %v152
    %v223 = vpop.f32.mrf.mxu0
    %v224 = vadd.f32 %v156, %v223
    %v225 = vpop.f32.mrf.mxu0
    %226 = vdwg.mxu0
    %vm227 = vcmask 64512
    %228 = vst.msk [vmem:[%s2] sm:$0xff] %vm227, %v224
    // Predicated region
    $region14: #{mlp_forward.1} parent=1 // pred_check
      _
    $region15: #{mlp_forward.1} parent=1 // pred_check_branch
      %230 = sbr.rel (0) target = $region17
    $region16: #{mlp_forward.1} parent=1 // pred_region
      _
    $region17: #{mlp_forward.1} parent=1 // pred_fallthru
      _
    // Predicated region
    $region18: #{mlp_forward.1} parent=1 // pred_check
      _
    $region19: #{mlp_forward.1} parent=1 // pred_check_branch
      %232 = sbr.rel (0) target = $region21
    $region20: #{mlp_forward.1} parent=1 // pred_region
      _
    $region21: #{mlp_forward.1} parent=1 // pred_fallthru
      _
    %233 = vsyncpa [#allocation3], 1

</llo_original>
